<compile_context>
chip_gen: v6e
topology: v6e:2x2x1
jax: 0.10.0
libtpu: 0.0.40
codegen_flags: <defaults>
</compile_context>

<pallas_src>
import functools

import jax
import jax.numpy as jnp
from jax.experimental import pallas as pl
from jax.experimental.pallas import tpu as pltpu

_LANE = 128
_BN_EPS = 1e-5


def _round_up(x: int, m: int) -> int:
    return ((x + m - 1) // m) * m


def _pad_to(arr, shape):
    pads = [(0, t - s) for s, t in zip(arr.shape, shape)]
    return jnp.pad(arr, pads)


# ----------------------------- Pallas kernel --------------------------------
def _graphsage_kernel(x_ref, a_ref,
                      w_in_ref, b_in_ref,
                      w_cat_ref, b_l_ref,
                      gamma_ref, beta_ref,
                      mask_ref,
                      w_out_ref, b_out_ref,
                      out_ref,
                      *, n_conv_layers: int, n_nodes: int):
    a = a_ref[...]                         # (N, N) bf16 row-normalized adjacency
    inv_n = 1.0 / float(n_nodes)

    # Input linear + ReLU (bf16 MXU inputs, f32 accumulate).
    h = (jnp.dot(x_ref[...], w_in_ref[...], preferred_element_type=jnp.float32)
         + b_in_ref[...])
    h = jnp.maximum(h, 0.0)                # (N, Hp) f32

    for l in range(n_conv_layers):         # static unroll over layers
        # SAGEConv: mean-aggregate neighbors, then one fused (2H -> H) matmul.
        hb = h.astype(jnp.bfloat16)
        agg = jnp.dot(a, hb, preferred_element_type=jnp.float32)        # (N, Hp)
        cat = jnp.concatenate([agg, h], axis=-1).astype(jnp.bfloat16)   # (N, 2Hp)
        z = (jnp.dot(cat, w_cat_ref[l], preferred_element_type=jnp.float32)
             + b_l_ref[l])                                              # (N, Hp)

        # BatchNorm1d over the node axis (training-mode batch statistics),
        # one-pass stats folded into a single scale/shift.
        s = jnp.sum(z, axis=0, keepdims=True)
        sq = jnp.sum(z * z, axis=0, keepdims=True)
        mean = s * inv_n
        var = jnp.maximum(sq * inv_n - mean * mean, 0.0)
        scale = gamma_ref[l] * jax.lax.rsqrt(var + _BN_EPS)
        shift = beta_ref[l] - mean * scale

        # BN + ReLU + dropout (precomputed inverted-scaling keep mask).
        z = jnp.maximum(z * scale + shift, 0.0)
        h = z * mask_ref[l]

    # Output linear + softmax over features (padded logits carry a -1e30 bias
    # so they contribute exactly 0 to the normalization).
    logits = (jnp.dot(h.astype(jnp.bfloat16), w_out_ref[...],
                      preferred_element_type=jnp.float32)
              + b_out_ref[...])
    m = jnp.max(logits, axis=-1, keepdims=True)
    e = jnp.exp(logits - m)
    out_ref[...] = e / jnp.sum(e, axis=-1, keepdims=True)


# ------------------------------- wrapper -------------------------------------
def graphsage_forward(x, edge_index, params, *, n_conv_layers, dropout_p, seed):
    """x: (N, input_dim) f32, edge_index: (2, E) int32 (row0=src, row1=dst)."""
    n_nodes, input_dim = x.shape
    hidden_dim = params["w_in"].shape[0]
    output_dim = params["w_out"].shape[0]
    assert n_nodes % 8 == 0, "node count must be a multiple of 8 (sublane dim)"
    # TODO(synk): general N would need a node-validity mask for the BN stats.

    ip = _round_up(input_dim, _LANE)
    hp = _round_up(hidden_dim, _LANE)
    op = _round_up(output_dim, _LANE)

    # --- glue: dense row-normalized adjacency for mean aggregation ----------
    src, dst = edge_index[0], edge_index[1]
    counts = jnp.zeros((n_nodes, n_nodes), jnp.float32).at[dst, src].add(1.0)
    deg = jnp.sum(counts, axis=1, keepdims=True)
    a_norm = (counts / jnp.maximum(deg, 1.0)).astype(jnp.bfloat16)

    # --- glue: pad to lane-dense dims, pre-transpose, fuse conv weights -----
    x_p = _pad_to(x, (n_nodes, ip)).astype(jnp.bfloat16)
    w_in_t = _pad_to(params["w_in"].T, (ip, hp)).astype(jnp.bfloat16)   # (Ip, Hp)
    b_in = _pad_to(params["b_in"], (hp,)).reshape(1, hp)                # (1, Hp)

    w_l_t = jnp.transpose(params["w_l"], (0, 2, 1))                     # (L, H, H)
    w_r_t = jnp.transpose(params["w_r"], (0, 2, 1))                     # (L, H, H)
    w_cat = jnp.zeros((n_conv_layers, 2 * hp, hp), jnp.float32)
    w_cat = w_cat.at[:, :hidden_dim, :hidden_dim].set(w_l_t)            # agg half
    w_cat = w_cat.at[:, hp:hp + hidden_dim, :hidden_dim].set(w_r_t)     # root half
    w_cat = w_cat.astype(jnp.bfloat16)                                  # (L, 2Hp, Hp)

    b_l = _pad_to(params["b_l"], (n_conv_layers, hp))[:, None, :]       # (L, 1, Hp)
    gamma = _pad_to(params["gamma"], (n_conv_layers, hp))[:, None, :]   # (L, 1, Hp)
    beta = _pad_to(params["beta"], (n_conv_layers, hp))[:, None, :]     # (L, 1, Hp)

    w_out_t = _pad_to(params["w_out"].T, (hp, op)).astype(jnp.bfloat16)  # (Hp, Op)
    b_out = jnp.full((op,), -1e30, jnp.float32)
    b_out = b_out.at[:output_dim].set(params["b_out"]).reshape(1, op)    # (1, Op)

    # --- glue: dropout keep/scale masks (inverted dropout, training mode) ---
    keep = jax.random.bernoulli(jax.random.PRNGKey(seed), p=1.0 - dropout_p,
                                shape=(n_conv_layers, n_nodes, hp))
    mask = keep.astype(jnp.float32) * (1.0 / (1.0 - dropout_p))

    kernel = functools.partial(_graphsage_kernel,
                               n_conv_layers=n_conv_layers,
                               n_nodes=n_nodes)

    # --- cost estimate (matmul-dominated) ------------------------------------
    flops = (2 * n_nodes * ip * hp
             + n_conv_layers * (2 * n_nodes * n_nodes * hp
                                + 2 * n_nodes * (2 * hp) * hp)
             + 2 * n_nodes * hp * op)
    transcendentals = n_nodes * op + n_conv_layers * hp
    operands = (x_p, a_norm, w_in_t, b_in, w_cat, b_l, gamma, beta, mask,
                w_out_t, b_out)
    bytes_accessed = sum(int(o.size) * o.dtype.itemsize for o in operands) \
        + n_nodes * op * 4

    vmem = pl.BlockSpec(memory_space=pltpu.MemorySpace.VMEM)

    out_padded = pl.pallas_call(
        kernel,
        out_shape=jax.ShapeDtypeStruct((n_nodes, op), jnp.float32),
        in_specs=[vmem] * len(operands),
        out_specs=vmem,
        compiler_params=pltpu.CompilerParams(vmem_limit_bytes=64 * 1024 * 1024),
        cost_estimate=pl.CostEstimate(flops=flops,
                                      transcendentals=transcendentals,
                                      bytes_accessed=bytes_accessed),
    )(*operands)

    return out_padded[:, :output_dim]


# ------------------------------ param init -----------------------------------
def init_params(key, input_dim, n_conv_layers, hidden_dim, output_dim):
    ks = jax.random.split(key, 6)
    return {
        "w_in": 0.1 * jax.random.normal(ks[0], (hidden_dim, input_dim), jnp.float32),
        "b_in": 0.01 * jnp.ones((hidden_dim,), jnp.float32),
        "w_l": 0.1 * jax.random.normal(ks[1], (n_conv_layers, hidden_dim, hidden_dim), jnp.float32),
        "b_l": 0.01 * jnp.ones((n_conv_layers, hidden_dim), jnp.float32),
        "w_r": 0.1 * jax.random.normal(ks[2], (n_conv_layers, hidden_dim, hidden_dim), jnp.float32),
        "gamma": jnp.ones((n_conv_layers, hidden_dim), jnp.float32),
        "beta": jnp.zeros((n_conv_layers, hidden_dim), jnp.float32),
        "w_out": 0.1 * jax.random.normal(ks[3], (output_dim, hidden_dim), jnp.float32),
        "b_out": 0.01 * jnp.ones((output_dim,), jnp.float32),
    }


# --------------------------------- main ---------------------------------------
if __name__ == "__main__":
    N_NODES = 64
    INPUT_DIM = 16
    HIDDEN_DIM = 32
    OUTPUT_DIM = 8
    N_CONV_LAYERS = 2
    N_EDGES = 256
    DROPOUT_P = 0.2

    key = jax.random.PRNGKey(0)
    k_x, k_e, k_p = jax.random.split(key, 3)

    x = jax.random.normal(k_x, (N_NODES, INPUT_DIM), jnp.float32)
    edge_index = jax.random.randint(k_e, (2, N_EDGES), 0, N_NODES, dtype=jnp.int32)
    params = init_params(k_p, INPUT_DIM, N_CONV_LAYERS, HIDDEN_DIM, OUTPUT_DIM)

    out = graphsage_forward(x, edge_index, params,
                            n_conv_layers=N_CONV_LAYERS,
                            dropout_p=DROPOUT_P,
                            seed=42)
    out = jax.block_until_ready(out)

    assert out.shape == (N_NODES, OUTPUT_DIM)
    assert bool(jnp.all(jnp.isfinite(out)))
    # rows of the softmax output should sum to ~1
    assert bool(jnp.allclose(jnp.sum(out, axis=-1), 1.0, atol=1e-4))
    print("KERNEL_OK")
</pallas_src>

<mosaic_0001>
module attributes {stable_mosaic.version = 11 : i64} {
  func.func @_graphsage_kernel(%arg0: memref<64x128xbf16, #tpu.memory_space<vmem>>, %arg1: memref<64x64xbf16, #tpu.memory_space<vmem>>, %arg2: memref<128x128xbf16, #tpu.memory_space<vmem>>, %arg3: memref<1x128xf32, #tpu.memory_space<vmem>>, %arg4: memref<2x256x128xbf16, #tpu.memory_space<vmem>>, %arg5: memref<2x1x128xf32, #tpu.memory_space<vmem>>, %arg6: memref<2x1x128xf32, #tpu.memory_space<vmem>>, %arg7: memref<2x1x128xf32, #tpu.memory_space<vmem>>, %arg8: memref<2x64x128xf32, #tpu.memory_space<vmem>>, %arg9: memref<128x128xbf16, #tpu.memory_space<vmem>>, %arg10: memref<1x128xf32, #tpu.memory_space<vmem>>, %arg11: memref<64x128xf32, #tpu.memory_space<vmem>>) attributes {dimension_semantics = [], scalar_prefetch = 0 : i64, scratch_operands = 0 : i64, tpu.core_type = #tpu.core_type<tc>} {
    %c0 = arith.constant 0 : index
    %c0_0 = arith.constant 0 : index
    %0 = vector.load %arg1[%c0, %c0_0] : memref<64x64xbf16, #tpu.memory_space<vmem>>, vector<64x64xbf16>
    %c0_1 = arith.constant 0 : index
    %c0_2 = arith.constant 0 : index
    %1 = vector.load %arg0[%c0_1, %c0_2] : memref<64x128xbf16, #tpu.memory_space<vmem>>, vector<64x128xbf16>
    %c0_3 = arith.constant 0 : index
    %c0_4 = arith.constant 0 : index
    %2 = vector.load %arg2[%c0_3, %c0_4] : memref<128x128xbf16, #tpu.memory_space<vmem>>, vector<128x128xbf16>
    %cst = arith.constant dense<0.000000e+00> : vector<64x128xf32>
    %3 = tpu.matmul %1, %2, %cst {dimension_numbers = #tpu.dot_dimension_numbers<[1], [0], [0], [1], [0, 0, 1, 1], [], []>} : vector<64x128xbf16>, vector<128x128xbf16>, vector<64x128xf32> -> vector<64x128xf32>
    %c0_5 = arith.constant 0 : index
    %c0_6 = arith.constant 0 : index
    %4 = vector.load %arg3[%c0_5, %c0_6] : memref<1x128xf32, #tpu.memory_space<vmem>>, vector<1x128xf32>
    %5 = vector.broadcast %4 : vector<1x128xf32> to vector<64x128xf32>
    %6 = arith.addf %3, %5 : vector<64x128xf32>
    %cst_7 = arith.constant 0.000000e+00 : f32
    %7 = vector.broadcast %cst_7 : f32 to vector<64x128xf32>
    %8 = arith.maximumf %6, %7 : vector<64x128xf32>
    %9 = arith.truncf %8 : vector<64x128xf32> to vector<64x128xbf16>
    %cst_8 = arith.constant dense<0.000000e+00> : vector<64x128xf32>
    %10 = tpu.matmul %0, %9, %cst_8 {dimension_numbers = #tpu.dot_dimension_numbers<[1], [0], [0], [1], [0, 0, 1, 1], [], []>} : vector<64x64xbf16>, vector<64x128xbf16>, vector<64x128xf32> -> vector<64x128xf32>
    %11 = tpu.concatenate %10, %8 in 1 : vector<64x128xf32>, vector<64x128xf32> -> vector<64x256xf32>
    %12 = arith.truncf %11 : vector<64x256xf32> to vector<64x256xbf16>
    %c0_9 = arith.constant 0 : index
    %c0_10 = arith.constant 0 : index
    %c0_11 = arith.constant 0 : index
    %13 = vector.load %arg4[%c0_9, %c0_10, %c0_11] : memref<2x256x128xbf16, #tpu.memory_space<vmem>>, vector<1x256x128xbf16>
    %14 = vector.shape_cast %13 : vector<1x256x128xbf16> to vector<256x128xbf16>
    %cst_12 = arith.constant dense<0.000000e+00> : vector<64x128xf32>
    %15 = tpu.matmul %12, %14, %cst_12 {dimension_numbers = #tpu.dot_dimension_numbers<[1], [0], [0], [1], [0, 0, 1, 1], [], []>} : vector<64x256xbf16>, vector<256x128xbf16>, vector<64x128xf32> -> vector<64x128xf32>
    %c0_13 = arith.constant 0 : index
    %c0_14 = arith.constant 0 : index
    %c0_15 = arith.constant 0 : index
    %16 = vector.load %arg5[%c0_13, %c0_14, %c0_15] : memref<2x1x128xf32, #tpu.memory_space<vmem>>, vector<1x1x128xf32>
    %17 = vector.shape_cast %16 : vector<1x1x128xf32> to vector<1x128xf32>
    %18 = vector.broadcast %17 : vector<1x128xf32> to vector<64x128xf32>
    %19 = arith.addf %15, %18 : vector<64x128xf32>
    %cst_16 = arith.constant dense<0.000000e+00> : vector<128xf32>
    %20 = vector.multi_reduction <add>, %19, %cst_16 [0] : vector<64x128xf32> to vector<128xf32>
    %21 = vector.shape_cast %20 : vector<128xf32> to vector<1x128xf32>
    %22 = arith.mulf %19, %19 : vector<64x128xf32>
    %cst_17 = arith.constant dense<0.000000e+00> : vector<128xf32>
    %23 = vector.multi_reduction <add>, %22, %cst_17 [0] : vector<64x128xf32> to vector<128xf32>
    %24 = vector.shape_cast %23 : vector<128xf32> to vector<1x128xf32>
    %cst_18 = arith.constant 1.562500e-02 : f32
    %25 = vector.broadcast %cst_18 : f32 to vector<1x128xf32>
    %26 = arith.mulf %21, %25 : vector<1x128xf32>
    %cst_19 = arith.constant 1.562500e-02 : f32
    %27 = vector.broadcast %cst_19 : f32 to vector<1x128xf32>
    %28 = arith.mulf %24, %27 : vector<1x128xf32>
    %29 = arith.mulf %26, %26 : vector<1x128xf32>
    %30 = arith.subf %28, %29 : vector<1x128xf32>
    %cst_20 = arith.constant 0.000000e+00 : f32
    %31 = vector.broadcast %cst_20 : f32 to vector<1x128xf32>
    %32 = arith.maximumf %30, %31 : vector<1x128xf32>
    %c0_21 = arith.constant 0 : index
    %c0_22 = arith.constant 0 : index
    %c0_23 = arith.constant 0 : index
    %33 = vector.load %arg6[%c0_21, %c0_22, %c0_23] : memref<2x1x128xf32, #tpu.memory_space<vmem>>, vector<1x1x128xf32>
    %34 = vector.shape_cast %33 : vector<1x1x128xf32> to vector<1x128xf32>
    %cst_24 = arith.constant 9.99999974E-6 : f32
    %35 = vector.broadcast %cst_24 : f32 to vector<1x128xf32>
    %36 = arith.addf %32, %35 : vector<1x128xf32>
    %37 = math.rsqrt %36 : vector<1x128xf32>
    %38 = arith.mulf %34, %37 : vector<1x128xf32>
    %c0_25 = arith.constant 0 : index
    %c0_26 = arith.constant 0 : index
    %c0_27 = arith.constant 0 : index
    %39 = vector.load %arg7[%c0_25, %c0_26, %c0_27] : memref<2x1x128xf32, #tpu.memory_space<vmem>>, vector<1x1x128xf32>
    %40 = vector.shape_cast %39 : vector<1x1x128xf32> to vector<1x128xf32>
    %41 = arith.mulf %26, %38 : vector<1x128xf32>
    %42 = arith.subf %40, %41 : vector<1x128xf32>
    %43 = vector.broadcast %38 : vector<1x128xf32> to vector<64x128xf32>
    %44 = arith.mulf %19, %43 : vector<64x128xf32>
    %45 = vector.broadcast %42 : vector<1x128xf32> to vector<64x128xf32>
    %46 = arith.addf %44, %45 : vector<64x128xf32>
    %cst_28 = arith.constant 0.000000e+00 : f32
    %47 = vector.broadcast %cst_28 : f32 to vector<64x128xf32>
    %48 = arith.maximumf %46, %47 : vector<64x128xf32>
    %c0_29 = arith.constant 0 : index
    %c0_30 = arith.constant 0 : index
    %c0_31 = arith.constant 0 : index
    %49 = vector.load %arg8[%c0_29, %c0_30, %c0_31] : memref<2x64x128xf32, #tpu.memory_space<vmem>>, vector<1x64x128xf32>
    %50 = vector.shape_cast %49 : vector<1x64x128xf32> to vector<64x128xf32>
    %51 = arith.mulf %48, %50 : vector<64x128xf32>
    %52 = arith.truncf %51 : vector<64x128xf32> to vector<64x128xbf16>
    %cst_32 = arith.constant dense<0.000000e+00> : vector<64x128xf32>
    %53 = tpu.matmul %0, %52, %cst_32 {dimension_numbers = #tpu.dot_dimension_numbers<[1], [0], [0], [1], [0, 0, 1, 1], [], []>} : vector<64x64xbf16>, vector<64x128xbf16>, vector<64x128xf32> -> vector<64x128xf32>
    %54 = tpu.concatenate %53, %51 in 1 : vector<64x128xf32>, vector<64x128xf32> -> vector<64x256xf32>
    %55 = arith.truncf %54 : vector<64x256xf32> to vector<64x256xbf16>
    %c1 = arith.constant 1 : index
    %c0_33 = arith.constant 0 : index
    %c0_34 = arith.constant 0 : index
    %56 = vector.load %arg4[%c1, %c0_33, %c0_34] : memref<2x256x128xbf16, #tpu.memory_space<vmem>>, vector<1x256x128xbf16>
    %57 = vector.shape_cast %56 : vector<1x256x128xbf16> to vector<256x128xbf16>
    %cst_35 = arith.constant dense<0.000000e+00> : vector<64x128xf32>
    %58 = tpu.matmul %55, %57, %cst_35 {dimension_numbers = #tpu.dot_dimension_numbers<[1], [0], [0], [1], [0, 0, 1, 1], [], []>} : vector<64x256xbf16>, vector<256x128xbf16>, vector<64x128xf32> -> vector<64x128xf32>
    %c1_36 = arith.constant 1 : index
    %c0_37 = arith.constant 0 : index
    %c0_38 = arith.constant 0 : index
    %59 = vector.load %arg5[%c1_36, %c0_37, %c0_38] : memref<2x1x128xf32, #tpu.memory_space<vmem>>, vector<1x1x128xf32>
    %60 = vector.shape_cast %59 : vector<1x1x128xf32> to vector<1x128xf32>
    %61 = vector.broadcast %60 : vector<1x128xf32> to vector<64x128xf32>
    %62 = arith.addf %58, %61 : vector<64x128xf32>
    %cst_39 = arith.constant dense<0.000000e+00> : vector<128xf32>
    %63 = vector.multi_reduction <add>, %62, %cst_39 [0] : vector<64x128xf32> to vector<128xf32>
    %64 = vector.shape_cast %63 : vector<128xf32> to vector<1x128xf32>
    %65 = arith.mulf %62, %62 : vector<64x128xf32>
    %cst_40 = arith.constant dense<0.000000e+00> : vector<128xf32>
    %66 = vector.multi_reduction <add>, %65, %cst_40 [0] : vector<64x128xf32> to vector<128xf32>
    %67 = vector.shape_cast %66 : vector<128xf32> to vector<1x128xf32>
    %cst_41 = arith.constant 1.562500e-02 : f32
    %68 = vector.broadcast %cst_41 : f32 to vector<1x128xf32>
    %69 = arith.mulf %64, %68 : vector<1x128xf32>
    %cst_42 = arith.constant 1.562500e-02 : f32
    %70 = vector.broadcast %cst_42 : f32 to vector<1x128xf32>
    %71 = arith.mulf %67, %70 : vector<1x128xf32>
    %72 = arith.mulf %69, %69 : vector<1x128xf32>
    %73 = arith.subf %71, %72 : vector<1x128xf32>
    %cst_43 = arith.constant 0.000000e+00 : f32
    %74 = vector.broadcast %cst_43 : f32 to vector<1x128xf32>
    %75 = arith.maximumf %73, %74 : vector<1x128xf32>
    %c1_44 = arith.constant 1 : index
    %c0_45 = arith.constant 0 : index
    %c0_46 = arith.constant 0 : index
    %76 = vector.load %arg6[%c1_44, %c0_45, %c0_46] : memref<2x1x128xf32, #tpu.memory_space<vmem>>, vector<1x1x128xf32>
    %77 = vector.shape_cast %76 : vector<1x1x128xf32> to vector<1x128xf32>
    %cst_47 = arith.constant 9.99999974E-6 : f32
    %78 = vector.broadcast %cst_47 : f32 to vector<1x128xf32>
    %79 = arith.addf %75, %78 : vector<1x128xf32>
    %80 = math.rsqrt %79 : vector<1x128xf32>
    %81 = arith.mulf %77, %80 : vector<1x128xf32>
    %c1_48 = arith.constant 1 : index
    %c0_49 = arith.constant 0 : index
    %c0_50 = arith.constant 0 : index
    %82 = vector.load %arg7[%c1_48, %c0_49, %c0_50] : memref<2x1x128xf32, #tpu.memory_space<vmem>>, vector<1x1x128xf32>
    %83 = vector.shape_cast %82 : vector<1x1x128xf32> to vector<1x128xf32>
    %84 = arith.mulf %69, %81 : vector<1x128xf32>
    %85 = arith.subf %83, %84 : vector<1x128xf32>
    %86 = vector.broadcast %81 : vector<1x128xf32> to vector<64x128xf32>
    %87 = arith.mulf %62, %86 : vector<64x128xf32>
    %88 = vector.broadcast %85 : vector<1x128xf32> to vector<64x128xf32>
    %89 = arith.addf %87, %88 : vector<64x128xf32>
    %cst_51 = arith.constant 0.000000e+00 : f32
    %90 = vector.broadcast %cst_51 : f32 to vector<64x128xf32>
    %91 = arith.maximumf %89, %90 : vector<64x128xf32>
    %c1_52 = arith.constant 1 : index
    %c0_53 = arith.constant 0 : index
    %c0_54 = arith.constant 0 : index
    %92 = vector.load %arg8[%c1_52, %c0_53, %c0_54] : memref<2x64x128xf32, #tpu.memory_space<vmem>>, vector<1x64x128xf32>
    %93 = vector.shape_cast %92 : vector<1x64x128xf32> to vector<64x128xf32>
    %94 = arith.mulf %91, %93 : vector<64x128xf32>
    %95 = arith.truncf %94 : vector<64x128xf32> to vector<64x128xbf16>
    %c0_55 = arith.constant 0 : index
    %c0_56 = arith.constant 0 : index
    %96 = vector.load %arg9[%c0_55, %c0_56] : memref<128x128xbf16, #tpu.memory_space<vmem>>, vector<128x128xbf16>
    %cst_57 = arith.constant dense<0.000000e+00> : vector<64x128xf32>
    %97 = tpu.matmul %95, %96, %cst_57 {dimension_numbers = #tpu.dot_dimension_numbers<[1], [0], [0], [1], [0, 0, 1, 1], [], []>} : vector<64x128xbf16>, vector<128x128xbf16>, vector<64x128xf32> -> vector<64x128xf32>
    %c0_58 = arith.constant 0 : index
    %c0_59 = arith.constant 0 : index
    %98 = vector.load %arg10[%c0_58, %c0_59] : memref<1x128xf32, #tpu.memory_space<vmem>>, vector<1x128xf32>
    %99 = vector.broadcast %98 : vector<1x128xf32> to vector<64x128xf32>
    %100 = arith.addf %97, %99 : vector<64x128xf32>
    %cst_60 = arith.constant dense<0xFF800000> : vector<64xf32>
    %101 = vector.multi_reduction <maximumf>, %100, %cst_60 [1] : vector<64x128xf32> to vector<64xf32>
    %102 = vector.shape_cast %101 : vector<64xf32> to vector<64x1xf32>
    %103 = vector.broadcast %102 : vector<64x1xf32> to vector<64x128xf32>
    %104 = arith.subf %100, %103 : vector<64x128xf32>
    %105 = math.exp %104 : vector<64x128xf32>
    %cst_61 = arith.constant dense<0.000000e+00> : vector<64xf32>
    %106 = vector.multi_reduction <add>, %105, %cst_61 [1] : vector<64x128xf32> to vector<64xf32>
    %107 = vector.shape_cast %106 : vector<64xf32> to vector<64x1xf32>
    %108 = vector.broadcast %107 : vector<64x1xf32> to vector<64x128xf32>
    %109 = arith.divf %105, %108 : vector<64x128xf32>
    %c0_62 = arith.constant 0 : index
    %c0_63 = arith.constant 0 : index
    %110 = vector.load %arg11[%c0_62, %c0_63] : memref<64x128xf32, #tpu.memory_space<vmem>>, vector<64x128xf32>
    tpu.vector_store %arg11[%c0_62, %c0_63], %109 {strides = array<i32>} : memref<64x128xf32, #tpu.memory_space<vmem>>, vector<64x128xf32>,
    return
  }
}

</mosaic_0001>

<llo_original>
// kernel: tpu_custom_call.1
$region0: #{tpu_custom_call.1}
  #allocation0 [shape = 'u32[]', space=smem, size = 0x4, offset = 0x4, fixed_abs, tag = 'smem constant byte address 0x4 - core index']
  #allocation1 [shape = 'u32[144,128]{1,0:T(1,128)}', space=vmem, size = 0x12000, scoped, tag = 'internal scratch']
  %s0 = inlined_call_operand.hbm [shape: bf16[64,128], index: 0, kind: input, shape index: {}]
  %s1 = inlined_call_operand.hbm [shape: bf16[64,64], index: 1, kind: input, shape index: {}]
  %s2 = inlined_call_operand.hbm [shape: bf16[128,128], index: 2, kind: input, shape index: {}]
  %s3 = inlined_call_operand.vmem [shape: f32[1,128], index: 3, kind: input, shape index: {}]
  %s4 = inlined_call_operand.hbm [shape: bf16[2,256,128], index: 4, kind: input, shape index: {}]
  %s5 = inlined_call_operand.vmem [shape: f32[2,1,128], index: 5, kind: input, shape index: {}]
  %s6 = inlined_call_operand.vmem [shape: f32[2,1,128], index: 6, kind: input, shape index: {}]
  %s7 = inlined_call_operand.vmem [shape: f32[2,1,128], index: 7, kind: input, shape index: {}]
  %s8 = inlined_call_operand.hbm [shape: f32[2,64,128], index: 8, kind: input, shape index: {}]
  %s9 = inlined_call_operand.hbm [shape: bf16[128,128], index: 9, kind: input, shape index: {}]
  %s10 = inlined_call_operand.vmem [shape: f32[1,128], index: 10, kind: input, shape index: {}]
  %s11 = inlined_call_operand.hbm [shape: f32[64,128], index: 11, kind: output, shape index: {}]
  %s12 = sld [smem:[#allocation0]]
  $region78: #{tpu_custom_call.1} parent=0
    _
  %s14 = ssub.s32 1, %s12
  %s15 = scalar_select 0, %s14, %s12
  $region1: #{tpu_custom_call.1} parent=0
    #allocation2 [shape = 'u8[16384]{0}', space=vmem, size = 0x4000, scoped, tag = 'input window, operand 0, single buffered']
    #allocation3 [shape = 's32[1]{0}', space=sflag, size = 0x4, scoped, tag = 'scoped memory for tpu_custom_call.1']
    #allocation4 [shape = 's32[1]{0}', space=sflag, size = 0x4, scoped, tag = 'scoped memory for tpu_custom_call.1']
    #allocation5 [shape = 'u8[16384]{0}', space=vmem, size = 0x4000, scoped, tag = 'input window, operand 1, single buffered']
    #allocation6 [shape = 's32[1]{0}', space=sflag, size = 0x4, scoped, tag = 'scoped memory for tpu_custom_call.1']
    #allocation7 [shape = 'u8[32768]{0}', space=vmem, size = 0x8000, scoped, tag = 'input window, operand 2, single buffered']
    #allocation8 [shape = 'u8[131072]{0}', space=vmem, size = 0x20000, scoped, tag = 'input window, operand 4, single buffered']
    #allocation9 [shape = 's32[1]{0}', space=sflag, size = 0x4, scoped, tag = 'scoped memory for tpu_custom_call.1']
    #allocation10 [shape = 'u8[65536]{0}', space=vmem, size = 0x10000, scoped, tag = 'input window, operand 8, single buffered']
    #allocation11 [shape = 'u8[32768]{0}', space=vmem, size = 0x8000, scoped, tag = 'input window, operand 9, single buffered']
    #allocation12 [shape = 's32[1]{0}', space=sflag, size = 0x4, scoped, tag = 'scoped memory for tpu_custom_call.1']
    #allocation13 [shape = 'u8[32768]{0}', space=vmem, size = 0x8000, scoped, tag = 'output window, operand 0, single buffered']
    %16 = vsyncpa [#allocation3], 0
    %17 = vsyncpa [#allocation6], 0
    %18 = vsyncpa [#allocation9], 0
    %19 = vsyncpa [#allocation12], 0
    %20 = vsyncpa [#allocation4], 0
    // Predicated region
    $region2: #{tpu_custom_call.1} parent=1 // pred_check
      _
    $region3: #{tpu_custom_call.1} parent=1 // pred_check_branch
      %22 = sbr.rel (0) target = $region5
    $region4: #{tpu_custom_call.1} parent=1 // pred_region
      %s24 = ssub.s32 512, 512
      %25 = vsyncadd [#allocation3], %s24
      %s26 = sshll.u32 [#allocation2], 4
      %s27 = int_to_ptr.vmem [resolvable:$true] %s26
      %32 = dma.hbm_to_vmem [thread:$0]  %s0, 512, %s27, [#allocation3], 64, 64, 4
    $region5: #{tpu_custom_call.1} parent=1 // pred_fallthru
      _
    // Predicated region
    $region6: #{tpu_custom_call.1} parent=1 // pred_check
      _
    $region7: #{tpu_custom_call.1} parent=1 // pred_check_branch
      %34 = sbr.rel (0) target = $region9
    $region8: #{tpu_custom_call.1} parent=1 // pred_region
      %s36 = ssub.s32 512, 512
      %37 = vsyncadd [#allocation6], %s36
      %s38 = sshll.u32 [#allocation5], 4
      %s39 = int_to_ptr.vmem [resolvable:$true] %s38
      %44 = dma.hbm_to_vmem [thread:$0]  %s1, 512, %s39, [#allocation6], 64, 64, 4
    $region9: #{tpu_custom_call.1} parent=1 // pred_fallthru
      _
    // Predicated region
    $region10: #{tpu_custom_call.1} parent=1 // pred_check
      _
    $region11: #{tpu_custom_call.1} parent=1 // pred_check_branch
      %46 = sbr.rel (0) target = $region13
    $region12: #{tpu_custom_call.1} parent=1 // pred_region
      %s48 = ssub.s32 1024, 1024
      %49 = vsyncadd [#allocation6], %s48
      %s50 = sshll.u32 [#allocation7], 4
      %s51 = int_to_ptr.vmem [resolvable:$true] %s50
      %56 = dma.hbm_to_vmem [thread:$0]  %s2, 1024, %s51, [#allocation6], 64, 64, 4
    $region13: #{tpu_custom_call.1} parent=1 // pred_fallthru
      _
    // Predicated region
    $region14: #{tpu_custom_call.1} parent=1 // pred_check
      _
    $region15: #{tpu_custom_call.1} parent=1 // pred_check_branch
      %58 = sbr.rel (0) target = $region17
    $region16: #{tpu_custom_call.1} parent=1 // pred_region
      _
    $region17: #{tpu_custom_call.1} parent=1 // pred_fallthru
      _
    // Predicated region
    $region18: #{tpu_custom_call.1} parent=1 // pred_check
      _
    $region19: #{tpu_custom_call.1} parent=1 // pred_check_branch
      %60 = sbr.rel (0) target = $region21
    $region20: #{tpu_custom_call.1} parent=1 // pred_region
      %s62 = ssub.s32 4096, 4096
      %63 = vsyncadd [#allocation9], %s62
      %s64 = sshll.u32 [#allocation8], 4
      %s65 = int_to_ptr.vmem [resolvable:$true] %s64
      %70 = dma.hbm_to_vmem [thread:$0]  %s4, 4096, %s65, [#allocation9], 64, 64, 4
    $region21: #{tpu_custom_call.1} parent=1 // pred_fallthru
      _
    // Predicated region
    $region22: #{tpu_custom_call.1} parent=1 // pred_check
      _
    $region23: #{tpu_custom_call.1} parent=1 // pred_check_branch
      %72 = sbr.rel (0) target = $region25
    $region24: #{tpu_custom_call.1} parent=1 // pred_region
      _
    $region25: #{tpu_custom_call.1} parent=1 // pred_fallthru
      _
    // Predicated region
    $region26: #{tpu_custom_call.1} parent=1 // pred_check
      _
    $region27: #{tpu_custom_call.1} parent=1 // pred_check_branch
      %74 = sbr.rel (0) target = $region29
    $region28: #{tpu_custom_call.1} parent=1 // pred_region
      _
    $region29: #{tpu_custom_call.1} parent=1 // pred_fallthru
      _
    // Predicated region
    $region30: #{tpu_custom_call.1} parent=1 // pred_check
      _
    $region31: #{tpu_custom_call.1} parent=1 // pred_check_branch
      %76 = sbr.rel (0) target = $region33
    $region32: #{tpu_custom_call.1} parent=1 // pred_region
      _
    $region33: #{tpu_custom_call.1} parent=1 // pred_fallthru
      _
    // Predicated region
    $region34: #{tpu_custom_call.1} parent=1 // pred_check
      _
    $region35: #{tpu_custom_call.1} parent=1 // pred_check_branch
      %78 = sbr.rel (0) target = $region37
    $region36: #{tpu_custom_call.1} parent=1 // pred_region
      %s80 = ssub.s32 2048, 2048
      %81 = vsyncadd [#allocation9], %s80
      %s82 = sshll.u32 [#allocation10], 4
      %s83 = int_to_ptr.vmem [resolvable:$true] %s82
      %88 = dma.hbm_to_vmem [thread:$0]  %s8, 2048, %s83, [#allocation9], 128, 128, 8
    $region37: #{tpu_custom_call.1} parent=1 // pred_fallthru
      _
    // Predicated region
    $region38: #{tpu_custom_call.1} parent=1 // pred_check
      _
    $region39: #{tpu_custom_call.1} parent=1 // pred_check_branch
      %90 = sbr.rel (0) target = $region41
    $region40: #{tpu_custom_call.1} parent=1 // pred_region
      %s92 = ssub.s32 1024, 1024
      %93 = vsyncadd [#allocation12], %s92
      %s94 = sshll.u32 [#allocation11], 4
      %s95 = int_to_ptr.vmem [resolvable:$true] %s94
      %100 = dma.hbm_to_vmem [thread:$0]  %s9, 1024, %s95, [#allocation12], 64, 64, 4
    $region41: #{tpu_custom_call.1} parent=1 // pred_fallthru
      _
    // Predicated region
    $region42: #{tpu_custom_call.1} parent=1 // pred_check
      _
    $region43: #{tpu_custom_call.1} parent=1 // pred_check_branch
      %102 = sbr.rel (0) target = $region45
    $region44: #{tpu_custom_call.1} parent=1 // pred_region
      _
    $region45: #{tpu_custom_call.1} parent=1 // pred_fallthru
      _
    // Predicated region
    $region46: #{tpu_custom_call.1} parent=1 // pred_check
      _
    $region47: #{tpu_custom_call.1} parent=1 // pred_check_branch
      %104 = sbr.rel (0) target = $region49
    $region48: #{tpu_custom_call.1} parent=1 // pred_region
      %105 = dma.done [#allocation3], 512
    $region49: #{tpu_custom_call.1} parent=1 // pred_fallthru
      _
    // Predicated region
    $region50: #{tpu_custom_call.1} parent=1 // pred_check
      _
    $region51: #{tpu_custom_call.1} parent=1 // pred_check_branch
      %107 = sbr.rel (0) target = $region53
    $region52: #{tpu_custom_call.1} parent=1 // pred_region
      %108 = dma.done [#allocation6], 512
    $region53: #{tpu_custom_call.1} parent=1 // pred_fallthru
      _
    // Predicated region
    $region54: #{tpu_custom_call.1} parent=1 // pred_check
      _
    $region55: #{tpu_custom_call.1} parent=1 // pred_check_branch
      %110 = sbr.rel (0) target = $region57
    $region56: #{tpu_custom_call.1} parent=1 // pred_region
      %111 = dma.done [#allocation6], 1024
    $region57: #{tpu_custom_call.1} parent=1 // pred_fallthru
      _
    // Predicated region
    $region58: #{tpu_custom_call.1} parent=1 // pred_check
      _
    $region59: #{tpu_custom_call.1} parent=1 // pred_check_branch
      %113 = sbr.rel (0) target = $region61
    $region60: #{tpu_custom_call.1} parent=1 // pred_region
      %114 = dma.done [#allocation9], 4096
    $region61: #{tpu_custom_call.1} parent=1 // pred_fallthru
      _
    // Predicated region
    $region62: #{tpu_custom_call.1} parent=1 // pred_check
      _
    $region63: #{tpu_custom_call.1} parent=1 // pred_check_branch
      %116 = sbr.rel (0) target = $region65
    $region64: #{tpu_custom_call.1} parent=1 // pred_region
      %117 = dma.done [#allocation9], 2048
    $region65: #{tpu_custom_call.1} parent=1 // pred_fallthru
      _
    // Predicated region
    $region66: #{tpu_custom_call.1} parent=1 // pred_check
      _
    $region67: #{tpu_custom_call.1} parent=1 // pred_check_branch
      %119 = sbr.rel (0) target = $region69
    $region68: #{tpu_custom_call.1} parent=1 // pred_region
      %120 = dma.done [#allocation12], 1024
    $region69: #{tpu_custom_call.1} parent=1 // pred_fallthru
      _
    %v122 = vld [vmem:[#allocation5] sm:$0xf]
    %v123 = vld [vmem:[#allocation5 + $0x4] sm:$0xf]
    %v124 = vld [vmem:[#allocation5 + $0x8] sm:$0xf]
    %v125 = vld [vmem:[#allocation5 + $0xc] sm:$0xf]
    %v126 = vld [vmem:[#allocation5 + $0x10] sm:$0xf]
    %v127 = vld [vmem:[#allocation5 + $0x14] sm:$0xf]
    %v128 = vld [vmem:[#allocation5 + $0x18] sm:$0xf]
    %v129 = vld [vmem:[#allocation5 + $0x1c] sm:$0xf]
    %v130 = vld [vmem:[#allocation2] sm:$0xf]
    %v131 = vld [vmem:[#allocation2 + $0x4] sm:$0xf]
    %v132 = vld [vmem:[#allocation2 + $0x8] sm:$0xf]
    %v133 = vld [vmem:[#allocation2 + $0xc] sm:$0xf]
    %v134 = vld [vmem:[#allocation2 + $0x10] sm:$0xf]
    %v135 = vld [vmem:[#allocation2 + $0x14] sm:$0xf]
    %v136 = vld [vmem:[#allocation2 + $0x18] sm:$0xf]
    %v137 = vld [vmem:[#allocation2 + $0x1c] sm:$0xf]
    %v138 = vld [vmem:[#allocation7] sm:$0xf]
    %v139 = vld [vmem:[#allocation7 + $0x4] sm:$0xf]
    %v140 = vld [vmem:[#allocation7 + $0x8] sm:$0xf]
    %v141 = vld [vmem:[#allocation7 + $0xc] sm:$0xf]
    %v142 = vld [vmem:[#allocation7 + $0x10] sm:$0xf]
    %v143 = vld [vmem:[#allocation7 + $0x14] sm:$0xf]
    %v144 = vld [vmem:[#allocation7 + $0x18] sm:$0xf]
    %v145 = vld [vmem:[#allocation7 + $0x1c] sm:$0xf]
    %v146 = vld [vmem:[#allocation7 + $0x20] sm:$0xf]
    %v147 = vld [vmem:[#allocation7 + $0x24] sm:$0xf]
    %v148 = vld [vmem:[#allocation7 + $0x28] sm:$0xf]
    %v149 = vld [vmem:[#allocation7 + $0x2c] sm:$0xf]
    %v150 = vld [vmem:[#allocation7 + $0x30] sm:$0xf]
    %v151 = vld [vmem:[#allocation7 + $0x34] sm:$0xf]
    %v152 = vld [vmem:[#allocation7 + $0x38] sm:$0xf]
    %v153 = vld [vmem:[#allocation7 + $0x3c] sm:$0xf]
    %v154 = vld [vmem:[%s3] sm:$0x1]
    %v156 = vlaneseq
    %v157 = vshrl.u32 %v156, 7
    %v158 = vsub.s32 0, %v157
    %v159 = vrot.slane %v154, %v158
    %v169 = vunpack.c.l.b16 %v130
    %v170 = vunpack.c.l.b16 %v131
    %v171 = vunpack.c.l.b16 %v132
    %v172 = vunpack.c.l.b16 %v133
    %v173 = vunpack.c.l.b16 %v134
    %v174 = vunpack.c.l.b16 %v135
    %v175 = vunpack.c.l.b16 %v136
    %v176 = vunpack.c.l.b16 %v137
    %v177 = vpack.c.b16 %v170, %v169
    %v178 = vpack.c.b16 %v172, %v171
    %v179 = vpack.c.b16 %v174, %v173
    %v180 = vpack.c.b16 %v176, %v175
    %v201 = vunpack.c.l.b16 %v138
    %v202 = vunpack.c.l.b16 %v139
    %v203 = vunpack.c.l.b16 %v140
    %v204 = vunpack.c.l.b16 %v141
    %v205 = vunpack.c.l.b16 %v142
    %v206 = vunpack.c.l.b16 %v143
    %v207 = vunpack.c.l.b16 %v144
    %v208 = vunpack.c.l.b16 %v145
    %v209 = vunpack.c.l.b16 %v146
    %v210 = vunpack.c.l.b16 %v147
    %v211 = vunpack.c.l.b16 %v148
    %v212 = vunpack.c.l.b16 %v149
    %v213 = vunpack.c.l.b16 %v150
    %v214 = vunpack.c.l.b16 %v151
    %v215 = vunpack.c.l.b16 %v152
    %v216 = vunpack.c.l.b16 %v153
    %v217 = vpack.c.b16 %v202, %v201
    %v218 = vpack.c.b16 %v204, %v203
    %v219 = vpack.c.b16 %v206, %v205
    %v220 = vpack.c.b16 %v208, %v207
    %v221 = vpack.c.b16 %v210, %v209
    %v222 = vpack.c.b16 %v212, %v211
    %v223 = vpack.c.b16 %v214, %v213
    %v224 = vpack.c.b16 %v216, %v215
    %233 = vmatprep.subr.bf16.mxu0 0
    %234 = vmatpush1.bf16.msra.mxu0 %v224
    %235 = vmatprep.subr.bf16.mxu0 0
    %236 = vmatpush1.bf16.msra.mxu0 %v223
    %237 = vmatprep.subr.bf16.mxu0 0
    %238 = vmatpush1.bf16.msra.mxu0 %v222
    %239 = vmatprep.subr.bf16.mxu0 0
    %240 = vmatpush1.bf16.msra.mxu0 %v221
    %241 = vmatprep.subr.bf16.mxu0 0
    %242 = vmatpush1.bf16.msra.mxu0 %v220
    %243 = vmatprep.subr.bf16.mxu0 0
    %244 = vmatpush1.bf16.msra.mxu0 %v219
    %245 = vmatprep.subr.bf16.mxu0 0
    %246 = vmatpush1.bf16.msra.mxu0 %v218
    %247 = vmatprep.subr.bf16.mxu0 0
    %248 = vmatpush1.bf16.msra.mxu0 %v217
    %249 = vmatprep.subr.bf16.mxu0 0
    %250 = vmatpush2.bf16.msra.mxu0 0
    %251 = vmatprep.subr.bf16.mxu0 0
    %252 = vmatpush2.bf16.msra.mxu0 0
    %253 = vmatprep.subr.bf16.mxu0 0
    %254 = vmatpush2.bf16.msra.mxu0 0
    %255 = vmatprep.subr.bf16.mxu0 0
    %256 = vmatpush2.bf16.msra.mxu0 0
    %257 = vmatprep.subr.bf16.mxu0 0
    %258 = vmatpush2.bf16.msra.mxu0 0
    %259 = vmatprep.subr.bf16.mxu0 0
    %260 = vmatpush2.bf16.msra.mxu0 0
    %261 = vmatprep.subr.bf16.mxu0 0
    %262 = vmatpush2.bf16.msra.mxu0 0
    %263 = vmatprep.subr.bf16.mxu0 0
    %264 = vmatpush2.bf16.msra.mxu0 0
    %265 = vmatprep.mubr.bf16.mxu0 0
    %266 = vmatmul.mubr.bf16.gmra.mxu0 %v177
    %v267 = vpop.f32.mrf.mxu0
    %v268 = vadd.f32 %v159, %v267
    %v269 = vpop.f32.mrf.mxu0
    %v270 = vpop.f32.mrf.mxu0
    %v271 = vadd.f32 %v159, %v270
    %v272 = vpop.f32.mrf.mxu0
    %273 = vmatprep.mubr.bf16.mxu0 0
    %274 = vmatmul.mubr.bf16.gmra.mxu0 %v178
    %v275 = vpop.f32.mrf.mxu0
    %v276 = vadd.f32 %v159, %v275
    %v277 = vpop.f32.mrf.mxu0
    %v278 = vpop.f32.mrf.mxu0
    %v279 = vadd.f32 %v159, %v278
    %v280 = vpop.f32.mrf.mxu0
    %281 = vmatprep.mubr.bf16.mxu0 0
    %282 = vmatmul.mubr.bf16.gmra.mxu0 %v179
    %v283 = vpop.f32.mrf.mxu0
    %v284 = vadd.f32 %v159, %v283
    %v285 = vpop.f32.mrf.mxu0
    %v286 = vpop.f32.mrf.mxu0
    %v287 = vadd.f32 %v159, %v286
    %v288 = vpop.f32.mrf.mxu0
    %289 = vmatprep.mubr.bf16.mxu0 0
    %290 = vmatmul.mubr.bf16.gmra.mxu0 %v180
    %v291 = vpop.f32.mrf.mxu0
    %v292 = vadd.f32 %v159, %v291
    %v293 = vpop.f32.mrf.mxu0
    %v294 = vpop.f32.mrf.mxu0
    %v295 = vadd.f32 %v159, %v294
    %v296 = vpop.f32.mrf.mxu0
    %297 = vdwg.mxu0
    %v298 = vmax.f32 %v268, 0.0
    %v299 = vmax.f32 %v271, 0.0
    %v300 = vmax.f32 %v276, 0.0
    %v301 = vmax.f32 %v279, 0.0
    %v302 = vmax.f32 %v284, 0.0
    %v303 = vmax.f32 %v287, 0.0
    %v304 = vmax.f32 %v292, 0.0
    %v305 = vmax.f32 %v295, 0.0
    %v306 = vpack.c.bf16 %v299, %v298
    %v307 = vpack.c.bf16 %v301, %v300
    %v308 = vpack.c.bf16 %v303, %v302
    %v309 = vpack.c.bf16 %v305, %v304
    %v318 = vunpack.c.l.b16 %v122
    %v319 = vunpack.c.l.b16 %v123
    %v320 = vunpack.c.l.b16 %v124
    %v321 = vunpack.c.l.b16 %v125
    %v322 = vunpack.c.l.b16 %v126
    %v323 = vunpack.c.l.b16 %v127
    %v324 = vunpack.c.l.b16 %v128
    %v325 = vunpack.c.l.b16 %v129
    %v326 = vpack.c.b16 %v319, %v318
    %v327 = vpack.c.b16 %v321, %v320
    %v328 = vpack.c.b16 %v323, %v322
    %v329 = vpack.c.b16 %v325, %v324
    %vm330 = vcmask 523264
    %v332 = vsel %vm330, %v326, 0
    %v335 = vsel %vm330, %v327, 0
    %v338 = vsel %vm330, %v328, 0
    %v341 = vsel %vm330, %v329, 0
    %343 = vmatprep.subr.bf16.mxu0 0
    %344 = vmatpush1.bf16.msra.mxu0 0
    %345 = vmatprep.subr.bf16.mxu0 0
    %346 = vmatpush1.bf16.msra.mxu0 0
    %347 = vmatprep.subr.bf16.mxu0 0
    %348 = vmatpush1.bf16.msra.mxu0 0
    %349 = vmatprep.subr.bf16.mxu0 0
    %350 = vmatpush1.bf16.msra.mxu0 0
    %351 = vmatprep.subr.bf16.mxu0 0
    %352 = vmatpush1.bf16.msra.mxu0 %v309
    %353 = vmatprep.subr.bf16.mxu0 0
    %354 = vmatpush1.bf16.msra.mxu0 %v308
    %355 = vmatprep.subr.bf16.mxu0 0
    %356 = vmatpush1.bf16.msra.mxu0 %v307
    %357 = vmatprep.subr.bf16.mxu0 0
    %358 = vmatpush1.bf16.msra.mxu0 %v306
    %359 = vmatprep.subr.bf16.mxu0 0
    %360 = vmatpush2.bf16.msra.mxu0 0
    %361 = vmatprep.subr.bf16.mxu0 0
    %362 = vmatpush2.bf16.msra.mxu0 0
    %363 = vmatprep.subr.bf16.mxu0 0
    %364 = vmatpush2.bf16.msra.mxu0 0
    %365 = vmatprep.subr.bf16.mxu0 0
    %366 = vmatpush2.bf16.msra.mxu0 0
    %367 = vmatprep.subr.bf16.mxu0 0
    %368 = vmatpush2.bf16.msra.mxu0 0
    %369 = vmatprep.subr.bf16.mxu0 0
    %370 = vmatpush2.bf16.msra.mxu0 0
    %371 = vmatprep.subr.bf16.mxu0 0
    %372 = vmatpush2.bf16.msra.mxu0 0
    %373 = vmatprep.subr.bf16.mxu0 0
    %374 = vmatpush2.bf16.msra.mxu0 0
    %375 = vmatprep.mubr.bf16.mxu0 0
    %376 = vmatmul.mubr.bf16.gmra.mxu0 %v332
    %v377 = vpop.f32.mrf.mxu0
    %v378 = vadd.f32 0.0, %v377
    %v379 = vpop.f32.mrf.mxu0
    %v380 = vpop.f32.mrf.mxu0
    %v381 = vadd.f32 0.0, %v380
    %v382 = vpop.f32.mrf.mxu0
    %383 = vmatprep.mubr.bf16.mxu0 0
    %384 = vmatmul.mubr.bf16.gmra.mxu0 %v335
    %v385 = vpop.f32.mrf.mxu0
    %v386 = vadd.f32 0.0, %v385
    %v387 = vpop.f32.mrf.mxu0
    %v388 = vpop.f32.mrf.mxu0
    %v389 = vadd.f32 0.0, %v388
    %v390 = vpop.f32.mrf.mxu0
    %391 = vmatprep.mubr.bf16.mxu0 0
    %392 = vmatmul.mubr.bf16.gmra.mxu0 %v338
    %v393 = vpop.f32.mrf.mxu0
    %v394 = vadd.f32 0.0, %v393
    %v395 = vpop.f32.mrf.mxu0
    %v396 = vpop.f32.mrf.mxu0
    %v397 = vadd.f32 0.0, %v396
    %v398 = vpop.f32.mrf.mxu0
    %399 = vmatprep.mubr.bf16.mxu0 0
    %400 = vmatmul.mubr.bf16.gmra.mxu0 %v341
    %v401 = vpop.f32.mrf.mxu0
    %v402 = vadd.f32 0.0, %v401
    %v403 = vpop.f32.mrf.mxu0
    %v404 = vpop.f32.mrf.mxu0
    %v405 = vadd.f32 0.0, %v404
    %v406 = vpop.f32.mrf.mxu0
    %407 = vdwg.mxu0
    %v408 = vpack.c.bf16 %v381, %v378
    %v409 = vpack.c.bf16 %v389, %v386
    %v410 = vpack.c.bf16 %v397, %v394
    %v411 = vpack.c.bf16 %v405, %v402
    %v412 = vld [vmem:[#allocation8] sm:$0xf]
    %v413 = vld [vmem:[#allocation8 + $0x4] sm:$0xf]
    %v414 = vld [vmem:[#allocation8 + $0x8] sm:$0xf]
    %v415 = vld [vmem:[#allocation8 + $0xc] sm:$0xf]
    %v416 = vld [vmem:[#allocation8 + $0x10] sm:$0xf]
    %v417 = vld [vmem:[#allocation8 + $0x14] sm:$0xf]
    %v418 = vld [vmem:[#allocation8 + $0x18] sm:$0xf]
    %v419 = vld [vmem:[#allocation8 + $0x1c] sm:$0xf]
    %v420 = vld [vmem:[#allocation8 + $0x20] sm:$0xf]
    %v421 = vld [vmem:[#allocation8 + $0x24] sm:$0xf]
    %v422 = vld [vmem:[#allocation8 + $0x28] sm:$0xf]
    %v423 = vld [vmem:[#allocation8 + $0x2c] sm:$0xf]
    %v424 = vld [vmem:[#allocation8 + $0x30] sm:$0xf]
    %v425 = vld [vmem:[#allocation8 + $0x34] sm:$0xf]
    %v426 = vld [vmem:[#allocation8 + $0x38] sm:$0xf]
    %v427 = vld [vmem:[#allocation8 + $0x3c] sm:$0xf]
    %v428 = vld [vmem:[#allocation8 + $0x40] sm:$0xf]
    %v429 = vld [vmem:[#allocation8 + $0x44] sm:$0xf]
    %v430 = vld [vmem:[#allocation8 + $0x48] sm:$0xf]
    %v431 = vld [vmem:[#allocation8 + $0x4c] sm:$0xf]
    %v432 = vld [vmem:[#allocation8 + $0x50] sm:$0xf]
    %v433 = vld [vmem:[#allocation8 + $0x54] sm:$0xf]
    %v434 = vld [vmem:[#allocation8 + $0x58] sm:$0xf]
    %v435 = vld [vmem:[#allocation8 + $0x5c] sm:$0xf]
    %v436 = vld [vmem:[#allocation8 + $0x60] sm:$0xf]
    %v437 = vld [vmem:[#allocation8 + $0x64] sm:$0xf]
    %v438 = vld [vmem:[#allocation8 + $0x68] sm:$0xf]
    %v439 = vld [vmem:[#allocation8 + $0x6c] sm:$0xf]
    %v440 = vld [vmem:[#allocation8 + $0x70] sm:$0xf]
    %v441 = vld [vmem:[#allocation8 + $0x74] sm:$0xf]
    %v442 = vld [vmem:[#allocation8 + $0x78] sm:$0xf]
    %v443 = vld [vmem:[#allocation8 + $0x7c] sm:$0xf]
    %v444 = vld [vmem:[%s5] sm:$0x1]
    %v446 = vlaneseq
    %v447 = vshrl.u32 %v446, 7
    %v448 = vsub.s32 0, %v447
    %v449 = vrot.slane %v444, %v448
    %v483 = vunpack.c.l.b16 %v412
    %v484 = vunpack.c.l.b16 %v413
    %v485 = vunpack.c.l.b16 %v414
    %v486 = vunpack.c.l.b16 %v415
    %v487 = vunpack.c.l.b16 %v416
    %v488 = vunpack.c.l.b16 %v417
    %v489 = vunpack.c.l.b16 %v418
    %v490 = vunpack.c.l.b16 %v419
    %v491 = vunpack.c.l.b16 %v420
    %v492 = vunpack.c.l.b16 %v421
    %v493 = vunpack.c.l.b16 %v422
    %v494 = vunpack.c.l.b16 %v423
    %v495 = vunpack.c.l.b16 %v424
    %v496 = vunpack.c.l.b16 %v425
    %v497 = vunpack.c.l.b16 %v426
    %v498 = vunpack.c.l.b16 %v427
    %v499 = vunpack.c.l.b16 %v428
    %v500 = vunpack.c.l.b16 %v429
    %v501 = vunpack.c.l.b16 %v430
    %v502 = vunpack.c.l.b16 %v431
    %v503 = vunpack.c.l.b16 %v432
    %v504 = vunpack.c.l.b16 %v433
    %v505 = vunpack.c.l.b16 %v434
    %v506 = vunpack.c.l.b16 %v435
    %v507 = vunpack.c.l.b16 %v436
    %v508 = vunpack.c.l.b16 %v437
    %v509 = vunpack.c.l.b16 %v438
    %v510 = vunpack.c.l.b16 %v439
    %v511 = vunpack.c.l.b16 %v440
    %v512 = vunpack.c.l.b16 %v441
    %v513 = vunpack.c.l.b16 %v442
    %v514 = vunpack.c.l.b16 %v443
    %v515 = vpack.c.b16 %v484, %v483
    %v516 = vpack.c.b16 %v486, %v485
    %v517 = vpack.c.b16 %v488, %v487
    %v518 = vpack.c.b16 %v490, %v489
    %v519 = vpack.c.b16 %v492, %v491
    %v520 = vpack.c.b16 %v494, %v493
    %v521 = vpack.c.b16 %v496, %v495
    %v522 = vpack.c.b16 %v498, %v497
    %v523 = vpack.c.b16 %v500, %v499
    %v524 = vpack.c.b16 %v502, %v501
    %v525 = vpack.c.b16 %v504, %v503
    %v526 = vpack.c.b16 %v506, %v505
    %v527 = vpack.c.b16 %v508, %v507
    %v528 = vpack.c.b16 %v510, %v509
    %v529 = vpack.c.b16 %v512, %v511
    %v530 = vpack.c.b16 %v514, %v513
    %547 = vmatprep.subr.bf16.mxu0 0
    %548 = vmatpush1.bf16.msra.mxu0 %v522
    %549 = vmatprep.subr.bf16.mxu0 0
    %550 = vmatpush1.bf16.msra.mxu0 %v521
    %551 = vmatprep.subr.bf16.mxu0 0
    %552 = vmatpush1.bf16.msra.mxu0 %v520
    %553 = vmatprep.subr.bf16.mxu0 0
    %554 = vmatpush1.bf16.msra.mxu0 %v519
    %555 = vmatprep.subr.bf16.mxu0 0
    %556 = vmatpush1.bf16.msra.mxu0 %v518
    %557 = vmatprep.subr.bf16.mxu0 0
    %558 = vmatpush1.bf16.msra.mxu0 %v517
    %559 = vmatprep.subr.bf16.mxu0 0
    %560 = vmatpush1.bf16.msra.mxu0 %v516
    %561 = vmatprep.subr.bf16.mxu0 0
    %562 = vmatpush1.bf16.msra.mxu0 %v515
    %563 = vmatprep.subr.bf16.mxu0 0
    %564 = vmatpush2.bf16.msra.mxu0 %v530
    %565 = vmatprep.subr.bf16.mxu0 0
    %566 = vmatpush2.bf16.msra.mxu0 %v529
    %567 = vmatprep.subr.bf16.mxu0 0
    %568 = vmatpush2.bf16.msra.mxu0 %v528
    %569 = vmatprep.subr.bf16.mxu0 0
    %570 = vmatpush2.bf16.msra.mxu0 %v527
    %571 = vmatprep.subr.bf16.mxu0 0
    %572 = vmatpush2.bf16.msra.mxu0 %v526
    %573 = vmatprep.subr.bf16.mxu0 0
    %574 = vmatpush2.bf16.msra.mxu0 %v525
    %575 = vmatprep.subr.bf16.mxu0 0
    %576 = vmatpush2.bf16.msra.mxu0 %v524
    %577 = vmatprep.subr.bf16.mxu0 0
    %578 = vmatpush2.bf16.msra.mxu0 %v523
    %579 = vmatprep.mubr.bf16.mxu0 %v306
    %580 = vmatmul.mubr.bf16.gmra.mxu0 %v408
    %v581 = vpop.f32.mrf.mxu0
    %v582 = vadd.f32 %v449, %v581
    %v583 = vpop.f32.mrf.mxu0
    %v584 = vpop.f32.mrf.mxu0
    %v585 = vadd.f32 %v449, %v584
    %v586 = vpop.f32.mrf.mxu0
    %587 = vmatprep.mubr.bf16.mxu0 %v307
    %588 = vmatmul.mubr.bf16.gmra.mxu0 %v409
    %v589 = vpop.f32.mrf.mxu0
    %v590 = vadd.f32 %v449, %v589
    %v591 = vpop.f32.mrf.mxu0
    %v592 = vpop.f32.mrf.mxu0
    %v593 = vadd.f32 %v449, %v592
    %v594 = vpop.f32.mrf.mxu0
    %595 = vmatprep.mubr.bf16.mxu0 %v308
    %596 = vmatmul.mubr.bf16.gmra.mxu0 %v410
    %v597 = vpop.f32.mrf.mxu0
    %v598 = vadd.f32 %v449, %v597
    %v599 = vpop.f32.mrf.mxu0
    %v600 = vpop.f32.mrf.mxu0
    %v601 = vadd.f32 %v449, %v600
    %v602 = vpop.f32.mrf.mxu0
    %603 = vmatprep.mubr.bf16.mxu0 %v309
    %604 = vmatmul.mubr.bf16.gmra.mxu0 %v411
    %v605 = vpop.f32.mrf.mxu0
    %v606 = vadd.f32 %v449, %v605
    %v607 = vpop.f32.mrf.mxu0
    %v608 = vpop.f32.mrf.mxu0
    %v609 = vadd.f32 %v449, %v608
    %v610 = vpop.f32.mrf.mxu0
    %611 = vdwg.mxu0
    %v612 = vadd.f32 %v582, %v585
    %v613 = vadd.f32 %v612, %v590
    %v614 = vadd.f32 %v613, %v593
    %v615 = vadd.f32 %v614, %v598
    %v616 = vadd.f32 %v615, %v601
    %v617 = vadd.f32 %v616, %v606
    %v618 = vadd.f32 %v617, %v609
    %v619 = vrot.slane %v618, 4
    %v620 = vadd.f32 %v618, %v619
    %v621 = vrot.slane %v620, 2
    %v622 = vadd.f32 %v620, %v621
    %v623 = vrot.slane %v622, 1
    %v624 = vadd.f32 %v622, %v623
    %v625 = vmul.f32 %v582, %v582
    %v626 = vmul.f32 %v585, %v585
    %v627 = vmul.f32 %v590, %v590
    %v628 = vmul.f32 %v593, %v593
    %v629 = vmul.f32 %v598, %v598
    %v630 = vmul.f32 %v601, %v601
    %v631 = vmul.f32 %v606, %v606
    %v632 = vmul.f32 %v609, %v609
    %v633 = vadd.f32 %v625, %v626
    %v634 = vadd.f32 %v633, %v627
    %v635 = vadd.f32 %v634, %v628
    %v636 = vadd.f32 %v635, %v629
    %v637 = vadd.f32 %v636, %v630
    %v638 = vadd.f32 %v637, %v631
    %v639 = vadd.f32 %v638, %v632
    %v640 = vrot.slane %v639, 4
    %v641 = vadd.f32 %v639, %v640
    %v642 = vrot.slane %v641, 2
    %v643 = vadd.f32 %v641, %v642
    %v644 = vrot.slane %v643, 1
    %v645 = vadd.f32 %v643, %v644
    %v646 = vmul.f32 %v624, 0.015625
    %v647 = vmul.f32 %v645, 0.015625
    %v648 = vmul.f32 %v646, %v646
    %v649 = vsub.f32 %v647, %v648
    %v650 = vmax.f32 %v649, 0.0
    %v651 = vld [vmem:[%s6] sm:$0x1]
    %v652 = vadd.f32 %v650, 1e-05
    %v653 = vrsqrt.pop %v652
    %v654 = vmul.f32 %v651, %v653
    %v655 = vld [vmem:[%s7] sm:$0x1]
    %v656 = vmul.f32 %v646, %v654
    %v657 = vsub.f32 %v655, %v656
    %v659 = vlaneseq
    %v660 = vshrl.u32 %v659, 7
    %v661 = vsub.s32 0, %v660
    %v662 = vrot.slane %v654, %v661
    %v664 = vmul.f32 %v582, %v662
    %v665 = vmul.f32 %v585, %v662
    %v666 = vmul.f32 %v590, %v662
    %v667 = vmul.f32 %v593, %v662
    %v668 = vmul.f32 %v598, %v662
    %v669 = vmul.f32 %v601, %v662
    %v670 = vmul.f32 %v606, %v662
    %v671 = vmul.f32 %v609, %v662
    %v673 = vlaneseq
    %v674 = vshrl.u32 %v673, 7
    %v675 = vsub.s32 0, %v674
    %v676 = vrot.slane %v657, %v675
    %v678 = vadd.f32 %v664, %v676
    %v679 = vadd.f32 %v665, %v676
    %v680 = vadd.f32 %v666, %v676
    %v681 = vadd.f32 %v667, %v676
    %v682 = vadd.f32 %v668, %v676
    %v683 = vadd.f32 %v669, %v676
    %v684 = vadd.f32 %v670, %v676
    %v685 = vadd.f32 %v671, %v676
    %v686 = vmax.f32 %v678, 0.0
    %v687 = vmax.f32 %v679, 0.0
    %v688 = vmax.f32 %v680, 0.0
    %v689 = vmax.f32 %v681, 0.0
    %v690 = vmax.f32 %v682, 0.0
    %v691 = vmax.f32 %v683, 0.0
    %v692 = vmax.f32 %v684, 0.0
    %v693 = vmax.f32 %v685, 0.0
    %v694 = vld [vmem:[#allocation10] sm:$0xff]
    %v695 = vld [vmem:[#allocation10 + $0x8] sm:$0xff]
    %v696 = vld [vmem:[#allocation10 + $0x10] sm:$0xff]
    %v697 = vld [vmem:[#allocation10 + $0x18] sm:$0xff]
    %v698 = vld [vmem:[#allocation10 + $0x20] sm:$0xff]
    %v699 = vld [vmem:[#allocation10 + $0x28] sm:$0xff]
    %v700 = vld [vmem:[#allocation10 + $0x30] sm:$0xff]
    %v701 = vld [vmem:[#allocation10 + $0x38] sm:$0xff]
    %v702 = vmul.f32 %v686, %v694
    %v703 = vmul.f32 %v687, %v695
    %v704 = vmul.f32 %v688, %v696
    %v705 = vmul.f32 %v689, %v697
    %v706 = vmul.f32 %v690, %v698
    %v707 = vmul.f32 %v691, %v699
    %v708 = vmul.f32 %v692, %v700
    %v709 = vmul.f32 %v693, %v701
    %v710 = vpack.c.bf16 %v703, %v702
    %v711 = vpack.c.bf16 %v705, %v704
    %v712 = vpack.c.bf16 %v707, %v706
    %v713 = vpack.c.bf16 %v709, %v708
    %714 = vmatprep.subr.bf16.mxu0 0
    %715 = vmatpush1.bf16.msra.mxu0 0
    %716 = vmatprep.subr.bf16.mxu0 0
    %717 = vmatpush1.bf16.msra.mxu0 0
    %718 = vmatprep.subr.bf16.mxu0 0
    %719 = vmatpush1.bf16.msra.mxu0 0
    %720 = vmatprep.subr.bf16.mxu0 0
    %721 = vmatpush1.bf16.msra.mxu0 0
    %722 = vmatprep.subr.bf16.mxu0 0
    %723 = vmatpush1.bf16.msra.mxu0 %v713
    %724 = vmatprep.subr.bf16.mxu0 0
    %725 = vmatpush1.bf16.msra.mxu0 %v712
    %726 = vmatprep.subr.bf16.mxu0 0
    %727 = vmatpush1.bf16.msra.mxu0 %v711
    %728 = vmatprep.subr.bf16.mxu0 0
    %729 = vmatpush1.bf16.msra.mxu0 %v710
    %730 = vmatprep.subr.bf16.mxu0 0
    %731 = vmatpush2.bf16.msra.mxu0 0
    %732 = vmatprep.subr.bf16.mxu0 0
    %733 = vmatpush2.bf16.msra.mxu0 0
    %734 = vmatprep.subr.bf16.mxu0 0
    %735 = vmatpush2.bf16.msra.mxu0 0
    %736 = vmatprep.subr.bf16.mxu0 0
    %737 = vmatpush2.bf16.msra.mxu0 0
    %738 = vmatprep.subr.bf16.mxu0 0
    %739 = vmatpush2.bf16.msra.mxu0 0
    %740 = vmatprep.subr.bf16.mxu0 0
    %741 = vmatpush2.bf16.msra.mxu0 0
    %742 = vmatprep.subr.bf16.mxu0 0
    %743 = vmatpush2.bf16.msra.mxu0 0
    %744 = vmatprep.subr.bf16.mxu0 0
    %745 = vmatpush2.bf16.msra.mxu0 0
    %746 = vmatprep.mubr.bf16.mxu0 0
    %747 = vmatmul.mubr.bf16.gmra.mxu0 %v332
    %v748 = vpop.f32.mrf.mxu0
    %v749 = vadd.f32 0.0, %v748
    %v750 = vpop.f32.mrf.mxu0
    %v751 = vpop.f32.mrf.mxu0
    %v752 = vadd.f32 0.0, %v751
    %v753 = vpop.f32.mrf.mxu0
    %754 = vmatprep.mubr.bf16.mxu0 0
    %755 = vmatmul.mubr.bf16.gmra.mxu0 %v335
    %v756 = vpop.f32.mrf.mxu0
    %v757 = vadd.f32 0.0, %v756
    %v758 = vpop.f32.mrf.mxu0
    %v759 = vpop.f32.mrf.mxu0
    %v760 = vadd.f32 0.0, %v759
    %v761 = vpop.f32.mrf.mxu0
    %762 = vmatprep.mubr.bf16.mxu0 0
    %763 = vmatmul.mubr.bf16.gmra.mxu0 %v338
    %v764 = vpop.f32.mrf.mxu0
    %v765 = vadd.f32 0.0, %v764
    %v766 = vpop.f32.mrf.mxu0
    %v767 = vpop.f32.mrf.mxu0
    %v768 = vadd.f32 0.0, %v767
    %v769 = vpop.f32.mrf.mxu0
    %770 = vmatprep.mubr.bf16.mxu0 0
    %771 = vmatmul.mubr.bf16.gmra.mxu0 %v341
    %v772 = vpop.f32.mrf.mxu0
    %v773 = vadd.f32 0.0, %v772
    %v774 = vpop.f32.mrf.mxu0
    %v775 = vpop.f32.mrf.mxu0
    %v776 = vadd.f32 0.0, %v775
    %v777 = vpop.f32.mrf.mxu0
    %778 = vdwg.mxu0
    %v779 = vpack.c.bf16 %v752, %v749
    %v780 = vpack.c.bf16 %v760, %v757
    %v781 = vpack.c.bf16 %v768, %v765
    %v782 = vpack.c.bf16 %v776, %v773
    %s783 = scalar_lea.vmem [#allocation8], 128
    %v784 = vld [vmem:[%s783] sm:$0xf]
    %v785 = vld [vmem:[%s783 + $0x4] sm:$0xf]
    %v786 = vld [vmem:[%s783 + $0x8] sm:$0xf]
    %v787 = vld [vmem:[%s783 + $0xc] sm:$0xf]
    %v788 = vld [vmem:[%s783 + $0x10] sm:$0xf]
    %v789 = vld [vmem:[%s783 + $0x14] sm:$0xf]
    %v790 = vld [vmem:[%s783 + $0x18] sm:$0xf]
    %v791 = vld [vmem:[%s783 + $0x1c] sm:$0xf]
    %v792 = vld [vmem:[%s783 + $0x20] sm:$0xf]
    %v793 = vld [vmem:[%s783 + $0x24] sm:$0xf]
    %v794 = vld [vmem:[%s783 + $0x28] sm:$0xf]
    %v795 = vld [vmem:[%s783 + $0x2c] sm:$0xf]
    %v796 = vld [vmem:[%s783 + $0x30] sm:$0xf]
    %v797 = vld [vmem:[%s783 + $0x34] sm:$0xf]
    %v798 = vld [vmem:[%s783 + $0x38] sm:$0xf]
    %v799 = vld [vmem:[%s783 + $0x3c] sm:$0xf]
    %v800 = vld [vmem:[%s783 + $0x40] sm:$0xf]
    %v801 = vld [vmem:[%s783 + $0x44] sm:$0xf]
    %v802 = vld [vmem:[%s783 + $0x48] sm:$0xf]
    %v803 = vld [vmem:[%s783 + $0x4c] sm:$0xf]
    %v804 = vld [vmem:[%s783 + $0x50] sm:$0xf]
    %v805 = vld [vmem:[%s783 + $0x54] sm:$0xf]
    %v806 = vld [vmem:[%s783 + $0x58] sm:$0xf]
    %v807 = vld [vmem:[%s783 + $0x5c] sm:$0xf]
    %v808 = vld [vmem:[%s783 + $0x60] sm:$0xf]
    %v809 = vld [vmem:[%s783 + $0x64] sm:$0xf]
    %v810 = vld [vmem:[%s783 + $0x68] sm:$0xf]
    %v811 = vld [vmem:[%s783 + $0x6c] sm:$0xf]
    %v812 = vld [vmem:[%s783 + $0x70] sm:$0xf]
    %v813 = vld [vmem:[%s783 + $0x74] sm:$0xf]
    %v814 = vld [vmem:[%s783 + $0x78] sm:$0xf]
    %v815 = vld [vmem:[%s783 + $0x7c] sm:$0xf]
    %s816 = scalar_lea.vmem %s5, 1
    %v817 = vld [vmem:[%s816] sm:$0x1]
    %v819 = vlaneseq
    %v820 = vshrl.u32 %v819, 7
    %v821 = vsub.s32 0, %v820
    %v822 = vrot.slane %v817, %v821
    %v856 = vunpack.c.l.b16 %v784
    %v857 = vunpack.c.l.b16 %v785
    %v858 = vunpack.c.l.b16 %v786
    %v859 = vunpack.c.l.b16 %v787
    %v860 = vunpack.c.l.b16 %v788
    %v861 = vunpack.c.l.b16 %v789
    %v862 = vunpack.c.l.b16 %v790
    %v863 = vunpack.c.l.b16 %v791
    %v864 = vunpack.c.l.b16 %v792
    %v865 = vunpack.c.l.b16 %v793
    %v866 = vunpack.c.l.b16 %v794
    %v867 = vunpack.c.l.b16 %v795
    %v868 = vunpack.c.l.b16 %v796
    %v869 = vunpack.c.l.b16 %v797
    %v870 = vunpack.c.l.b16 %v798
    %v871 = vunpack.c.l.b16 %v799
    %v872 = vunpack.c.l.b16 %v800
    %v873 = vunpack.c.l.b16 %v801
    %v874 = vunpack.c.l.b16 %v802
    %v875 = vunpack.c.l.b16 %v803
    %v876 = vunpack.c.l.b16 %v804
    %v877 = vunpack.c.l.b16 %v805
    %v878 = vunpack.c.l.b16 %v806
    %v879 = vunpack.c.l.b16 %v807
    %v880 = vunpack.c.l.b16 %v808
    %v881 = vunpack.c.l.b16 %v809
    %v882 = vunpack.c.l.b16 %v810
    %v883 = vunpack.c.l.b16 %v811
    %v884 = vunpack.c.l.b16 %v812
    %v885 = vunpack.c.l.b16 %v813
    %v886 = vunpack.c.l.b16 %v814
    %v887 = vunpack.c.l.b16 %v815
    %v888 = vpack.c.b16 %v857, %v856
    %v889 = vpack.c.b16 %v859, %v858
    %v890 = vpack.c.b16 %v861, %v860
    %v891 = vpack.c.b16 %v863, %v862
    %v892 = vpack.c.b16 %v865, %v864
    %v893 = vpack.c.b16 %v867, %v866
    %v894 = vpack.c.b16 %v869, %v868
    %v895 = vpack.c.b16 %v871, %v870
    %v896 = vpack.c.b16 %v873, %v872
    %v897 = vpack.c.b16 %v875, %v874
    %v898 = vpack.c.b16 %v877, %v876
    %v899 = vpack.c.b16 %v879, %v878
    %v900 = vpack.c.b16 %v881, %v880
    %v901 = vpack.c.b16 %v883, %v882
    %v902 = vpack.c.b16 %v885, %v884
    %v903 = vpack.c.b16 %v887, %v886
    %920 = vmatprep.subr.bf16.mxu0 0
    %921 = vmatpush1.bf16.msra.mxu0 %v895
    %922 = vmatprep.subr.bf16.mxu0 0
    %923 = vmatpush1.bf16.msra.mxu0 %v894
    %924 = vmatprep.subr.bf16.mxu0 0
    %925 = vmatpush1.bf16.msra.mxu0 %v893
    %926 = vmatprep.subr.bf16.mxu0 0
    %927 = vmatpush1.bf16.msra.mxu0 %v892
    %928 = vmatprep.subr.bf16.mxu0 0
    %929 = vmatpush1.bf16.msra.mxu0 %v891
    %930 = vmatprep.subr.bf16.mxu0 0
    %931 = vmatpush1.bf16.msra.mxu0 %v890
    %932 = vmatprep.subr.bf16.mxu0 0
    %933 = vmatpush1.bf16.msra.mxu0 %v889
    %934 = vmatprep.subr.bf16.mxu0 0
    %935 = vmatpush1.bf16.msra.mxu0 %v888
    %936 = vmatprep.subr.bf16.mxu0 0
    %937 = vmatpush2.bf16.msra.mxu0 %v903
    %938 = vmatprep.subr.bf16.mxu0 0
    %939 = vmatpush2.bf16.msra.mxu0 %v902
    %940 = vmatprep.subr.bf16.mxu0 0
    %941 = vmatpush2.bf16.msra.mxu0 %v901
    %942 = vmatprep.subr.bf16.mxu0 0
    %943 = vmatpush2.bf16.msra.mxu0 %v900
    %944 = vmatprep.subr.bf16.mxu0 0
    %945 = vmatpush2.bf16.msra.mxu0 %v899
    %946 = vmatprep.subr.bf16.mxu0 0
    %947 = vmatpush2.bf16.msra.mxu0 %v898
    %948 = vmatprep.subr.bf16.mxu0 0
    %949 = vmatpush2.bf16.msra.mxu0 %v897
    %950 = vmatprep.subr.bf16.mxu0 0
    %951 = vmatpush2.bf16.msra.mxu0 %v896
    %952 = vmatprep.mubr.bf16.mxu0 %v710
    %953 = vmatmul.mubr.bf16.gmra.mxu0 %v779
    %v954 = vpop.f32.mrf.mxu0
    %v955 = vadd.f32 %v822, %v954
    %v956 = vpop.f32.mrf.mxu0
    %v957 = vpop.f32.mrf.mxu0
    %v958 = vadd.f32 %v822, %v957
    %v959 = vpop.f32.mrf.mxu0
    %960 = vmatprep.mubr.bf16.mxu0 %v711
    %961 = vmatmul.mubr.bf16.gmra.mxu0 %v780
    %v962 = vpop.f32.mrf.mxu0
    %v963 = vadd.f32 %v822, %v962
    %v964 = vpop.f32.mrf.mxu0
    %v965 = vpop.f32.mrf.mxu0
    %v966 = vadd.f32 %v822, %v965
    %v967 = vpop.f32.mrf.mxu0
    %968 = vmatprep.mubr.bf16.mxu0 %v712
    %969 = vmatmul.mubr.bf16.gmra.mxu0 %v781
    %v970 = vpop.f32.mrf.mxu0
    %v971 = vadd.f32 %v822, %v970
    %v972 = vpop.f32.mrf.mxu0
    %v973 = vpop.f32.mrf.mxu0
    %v974 = vadd.f32 %v822, %v973
    %v975 = vpop.f32.mrf.mxu0
    %976 = vmatprep.mubr.bf16.mxu0 %v713
    %977 = vmatmul.mubr.bf16.gmra.mxu0 %v782
    %v978 = vpop.f32.mrf.mxu0
    %v979 = vadd.f32 %v822, %v978
    %v980 = vpop.f32.mrf.mxu0
    %v981 = vpop.f32.mrf.mxu0
    %v982 = vadd.f32 %v822, %v981
    %v983 = vpop.f32.mrf.mxu0
    %984 = vdwg.mxu0
    %v985 = vadd.f32 %v955, %v958
    %v986 = vadd.f32 %v985, %v963
    %v987 = vadd.f32 %v986, %v966
    %v988 = vadd.f32 %v987, %v971
    %v989 = vadd.f32 %v988, %v974
    %v990 = vadd.f32 %v989, %v979
    %v991 = vadd.f32 %v990, %v982
    %v992 = vrot.slane %v991, 4
    %v993 = vadd.f32 %v991, %v992
    %v994 = vrot.slane %v993, 2
    %v995 = vadd.f32 %v993, %v994
    %v996 = vrot.slane %v995, 1
    %v997 = vadd.f32 %v995, %v996
    %v998 = vmul.f32 %v955, %v955
    %v999 = vmul.f32 %v958, %v958
    %v1000 = vmul.f32 %v963, %v963
    %v1001 = vmul.f32 %v966, %v966
    %v1002 = vmul.f32 %v971, %v971
    %v1003 = vmul.f32 %v974, %v974
    %v1004 = vmul.f32 %v979, %v979
    %v1005 = vmul.f32 %v982, %v982
    %v1006 = vadd.f32 %v998, %v999
    %v1007 = vadd.f32 %v1006, %v1000
    %v1008 = vadd.f32 %v1007, %v1001
    %v1009 = vadd.f32 %v1008, %v1002
    %v1010 = vadd.f32 %v1009, %v1003
    %v1011 = vadd.f32 %v1010, %v1004
    %v1012 = vadd.f32 %v1011, %v1005
    %v1013 = vrot.slane %v1012, 4
    %v1014 = vadd.f32 %v1012, %v1013
    %v1015 = vrot.slane %v1014, 2
    %v1016 = vadd.f32 %v1014, %v1015
    %v1017 = vrot.slane %v1016, 1
    %v1018 = vadd.f32 %v1016, %v1017
    %v1019 = vmul.f32 %v997, 0.015625
    %v1020 = vmul.f32 %v1018, 0.015625
    %v1021 = vmul.f32 %v1019, %v1019
    %v1022 = vsub.f32 %v1020, %v1021
    %v1023 = vmax.f32 %v1022, 0.0
    %s1024 = scalar_lea.vmem %s6, 1
    %v1025 = vld [vmem:[%s1024] sm:$0x1]
    %v1026 = vadd.f32 %v1023, 1e-05
    %v1027 = vrsqrt.pop %v1026
    %v1028 = vmul.f32 %v1025, %v1027
    %s1029 = scalar_lea.vmem %s7, 1
    %v1030 = vld [vmem:[%s1029] sm:$0x1]
    %v1031 = vmul.f32 %v1019, %v1028
    %v1032 = vsub.f32 %v1030, %v1031
    %v1034 = vlaneseq
    %v1035 = vshrl.u32 %v1034, 7
    %v1036 = vsub.s32 0, %v1035
    %v1037 = vrot.slane %v1028, %v1036
    %v1039 = vmul.f32 %v955, %v1037
    %v1040 = vmul.f32 %v958, %v1037
    %v1041 = vmul.f32 %v963, %v1037
    %v1042 = vmul.f32 %v966, %v1037
    %v1043 = vmul.f32 %v971, %v1037
    %v1044 = vmul.f32 %v974, %v1037
    %v1045 = vmul.f32 %v979, %v1037
    %v1046 = vmul.f32 %v982, %v1037
    %v1048 = vlaneseq
    %v1049 = vshrl.u32 %v1048, 7
    %v1050 = vsub.s32 0, %v1049
    %v1051 = vrot.slane %v1032, %v1050
    %v1053 = vadd.f32 %v1039, %v1051
    %v1054 = vadd.f32 %v1040, %v1051
    %v1055 = vadd.f32 %v1041, %v1051
    %v1056 = vadd.f32 %v1042, %v1051
    %v1057 = vadd.f32 %v1043, %v1051
    %v1058 = vadd.f32 %v1044, %v1051
    %v1059 = vadd.f32 %v1045, %v1051
    %v1060 = vadd.f32 %v1046, %v1051
    %v1061 = vmax.f32 %v1053, 0.0
    %v1062 = vmax.f32 %v1054, 0.0
    %v1063 = vmax.f32 %v1055, 0.0
    %v1064 = vmax.f32 %v1056, 0.0
    %v1065 = vmax.f32 %v1057, 0.0
    %v1066 = vmax.f32 %v1058, 0.0
    %v1067 = vmax.f32 %v1059, 0.0
    %v1068 = vmax.f32 %v1060, 0.0
    %s1069 = scalar_lea.vmem [#allocation10], 64
    %v1070 = vld [vmem:[%s1069] sm:$0xff]
    %v1071 = vld [vmem:[%s1069 + $0x8] sm:$0xff]
    %v1072 = vld [vmem:[%s1069 + $0x10] sm:$0xff]
    %v1073 = vld [vmem:[%s1069 + $0x18] sm:$0xff]
    %v1074 = vld [vmem:[%s1069 + $0x20] sm:$0xff]
    %v1075 = vld [vmem:[%s1069 + $0x28] sm:$0xff]
    %v1076 = vld [vmem:[%s1069 + $0x30] sm:$0xff]
    %v1077 = vld [vmem:[%s1069 + $0x38] sm:$0xff]
    %v1078 = vmul.f32 %v1061, %v1070
    %v1079 = vmul.f32 %v1062, %v1071
    %v1080 = vmul.f32 %v1063, %v1072
    %v1081 = vmul.f32 %v1064, %v1073
    %v1082 = vmul.f32 %v1065, %v1074
    %v1083 = vmul.f32 %v1066, %v1075
    %v1084 = vmul.f32 %v1067, %v1076
    %v1085 = vmul.f32 %v1068, %v1077
    %v1086 = vpack.c.bf16 %v1079, %v1078
    %v1087 = vpack.c.bf16 %v1081, %v1080
    %v1088 = vpack.c.bf16 %v1083, %v1082
    %v1089 = vpack.c.bf16 %v1085, %v1084
    %v1090 = vld [vmem:[#allocation11] sm:$0xf]
    %v1091 = vld [vmem:[#allocation11 + $0x4] sm:$0xf]
    %v1092 = vld [vmem:[#allocation11 + $0x8] sm:$0xf]
    %v1093 = vld [vmem:[#allocation11 + $0xc] sm:$0xf]
    %v1094 = vld [vmem:[#allocation11 + $0x10] sm:$0xf]
    %v1095 = vld [vmem:[#allocation11 + $0x14] sm:$0xf]
    %v1096 = vld [vmem:[#allocation11 + $0x18] sm:$0xf]
    %v1097 = vld [vmem:[#allocation11 + $0x1c] sm:$0xf]
    %v1098 = vld [vmem:[#allocation11 + $0x20] sm:$0xf]
    %v1099 = vld [vmem:[#allocation11 + $0x24] sm:$0xf]
    %v1100 = vld [vmem:[#allocation11 + $0x28] sm:$0xf]
    %v1101 = vld [vmem:[#allocation11 + $0x2c] sm:$0xf]
    %v1102 = vld [vmem:[#allocation11 + $0x30] sm:$0xf]
    %v1103 = vld [vmem:[#allocation11 + $0x34] sm:$0xf]
    %v1104 = vld [vmem:[#allocation11 + $0x38] sm:$0xf]
    %v1105 = vld [vmem:[#allocation11 + $0x3c] sm:$0xf]
    %v1106 = vld [vmem:[%s10] sm:$0x1]
    %v1108 = vlaneseq
    %v1109 = vshrl.u32 %v1108, 7
    %v1110 = vsub.s32 0, %v1109
    %v1111 = vrot.slane %v1106, %v1110
    %v1129 = vunpack.c.l.b16 %v1090
    %v1130 = vunpack.c.l.b16 %v1091
    %v1131 = vunpack.c.l.b16 %v1092
    %v1132 = vunpack.c.l.b16 %v1093
    %v1133 = vunpack.c.l.b16 %v1094
    %v1134 = vunpack.c.l.b16 %v1095
    %v1135 = vunpack.c.l.b16 %v1096
    %v1136 = vunpack.c.l.b16 %v1097
    %v1137 = vunpack.c.l.b16 %v1098
    %v1138 = vunpack.c.l.b16 %v1099
    %v1139 = vunpack.c.l.b16 %v1100
    %v1140 = vunpack.c.l.b16 %v1101
    %v1141 = vunpack.c.l.b16 %v1102
    %v1142 = vunpack.c.l.b16 %v1103
    %v1143 = vunpack.c.l.b16 %v1104
    %v1144 = vunpack.c.l.b16 %v1105
    %v1145 = vpack.c.b16 %v1130, %v1129
    %v1146 = vpack.c.b16 %v1132, %v1131
    %v1147 = vpack.c.b16 %v1134, %v1133
    %v1148 = vpack.c.b16 %v1136, %v1135
    %v1149 = vpack.c.b16 %v1138, %v1137
    %v1150 = vpack.c.b16 %v1140, %v1139
    %v1151 = vpack.c.b16 %v1142, %v1141
    %v1152 = vpack.c.b16 %v1144, %v1143
    %1161 = vmatprep.subr.bf16.mxu0 0
    %1162 = vmatpush1.bf16.msra.mxu0 %v1152
    %1163 = vmatprep.subr.bf16.mxu0 0
    %1164 = vmatpush1.bf16.msra.mxu0 %v1151
    %1165 = vmatprep.subr.bf16.mxu0 0
    %1166 = vmatpush1.bf16.msra.mxu0 %v1150
    %1167 = vmatprep.subr.bf16.mxu0 0
    %1168 = vmatpush1.bf16.msra.mxu0 %v1149
    %1169 = vmatprep.subr.bf16.mxu0 0
    %1170 = vmatpush1.bf16.msra.mxu0 %v1148
    %1171 = vmatprep.subr.bf16.mxu0 0
    %1172 = vmatpush1.bf16.msra.mxu0 %v1147
    %1173 = vmatprep.subr.bf16.mxu0 0
    %1174 = vmatpush1.bf16.msra.mxu0 %v1146
    %1175 = vmatprep.subr.bf16.mxu0 0
    %1176 = vmatpush1.bf16.msra.mxu0 %v1145
    %1177 = vmatprep.subr.bf16.mxu0 0
    %1178 = vmatpush2.bf16.msra.mxu0 0
    %1179 = vmatprep.subr.bf16.mxu0 0
    %1180 = vmatpush2.bf16.msra.mxu0 0
    %1181 = vmatprep.subr.bf16.mxu0 0
    %1182 = vmatpush2.bf16.msra.mxu0 0
    %1183 = vmatprep.subr.bf16.mxu0 0
    %1184 = vmatpush2.bf16.msra.mxu0 0
    %1185 = vmatprep.subr.bf16.mxu0 0
    %1186 = vmatpush2.bf16.msra.mxu0 0
    %1187 = vmatprep.subr.bf16.mxu0 0
    %1188 = vmatpush2.bf16.msra.mxu0 0
    %1189 = vmatprep.subr.bf16.mxu0 0
    %1190 = vmatpush2.bf16.msra.mxu0 0
    %1191 = vmatprep.subr.bf16.mxu0 0
    %1192 = vmatpush2.bf16.msra.mxu0 0
    %1193 = vmatprep.mubr.bf16.mxu0 0
    %1194 = vmatmul.mubr.bf16.gmra.mxu0 %v1086
    %v1195 = vpop.f32.mrf.mxu0
    %v1196 = vadd.f32 %v1111, %v1195
    %v1197 = vpop.f32.mrf.mxu0
    %v1198 = vpop.f32.mrf.mxu0
    %v1199 = vadd.f32 %v1111, %v1198
    %v1200 = vpop.f32.mrf.mxu0
    %1201 = vmatprep.mubr.bf16.mxu0 0
    %1202 = vmatmul.mubr.bf16.gmra.mxu0 %v1087
    %v1203 = vpop.f32.mrf.mxu0
    %v1204 = vadd.f32 %v1111, %v1203
    %v1205 = vpop.f32.mrf.mxu0
    %v1206 = vpop.f32.mrf.mxu0
    %v1207 = vadd.f32 %v1111, %v1206
    %v1208 = vpop.f32.mrf.mxu0
    %1209 = vmatprep.mubr.bf16.mxu0 0
    %1210 = vmatmul.mubr.bf16.gmra.mxu0 %v1088
    %v1211 = vpop.f32.mrf.mxu0
    %v1212 = vadd.f32 %v1111, %v1211
    %v1213 = vpop.f32.mrf.mxu0
    %v1214 = vpop.f32.mrf.mxu0
    %v1215 = vadd.f32 %v1111, %v1214
    %v1216 = vpop.f32.mrf.mxu0
    %1217 = vmatprep.mubr.bf16.mxu0 0
    %1218 = vmatmul.mubr.bf16.gmra.mxu0 %v1089
    %v1219 = vpop.f32.mrf.mxu0
    %v1220 = vadd.f32 %v1111, %v1219
    %v1221 = vpop.f32.mrf.mxu0
    %v1222 = vpop.f32.mrf.mxu0
    %v1223 = vadd.f32 %v1111, %v1222
    %v1224 = vpop.f32.mrf.mxu0
    %1225 = vdwg.mxu0
    %1226 = vmax.xlane.f32.xlu0 %v1196
    %v1227 = vpop.xlane.xlu0 %1226
    %1228 = vmax.xlane.f32.xlu0 %v1199
    %v1229 = vpop.xlane.xlu0 %1228
    %1230 = vmax.xlane.f32.xlu0 %v1204
    %v1231 = vpop.xlane.xlu0 %1230
    %1232 = vmax.xlane.f32.xlu0 %v1207
    %v1233 = vpop.xlane.xlu0 %1232
    %1234 = vmax.xlane.f32.xlu0 %v1212
    %v1235 = vpop.xlane.xlu0 %1234
    %1236 = vmax.xlane.f32.xlu0 %v1215
    %v1237 = vpop.xlane.xlu0 %1236
    %1238 = vmax.xlane.f32.xlu0 %v1220
    %v1239 = vpop.xlane.xlu0 %1238
    %1240 = vmax.xlane.f32.xlu0 %v1223
    %v1241 = vpop.xlane.xlu0 %1240
    %v1242 = vsub.f32 %v1196, %v1227
    %v1243 = vsub.f32 %v1199, %v1229
    %v1244 = vsub.f32 %v1204, %v1231
    %v1245 = vsub.f32 %v1207, %v1233
    %v1246 = vsub.f32 %v1212, %v1235
    %v1247 = vsub.f32 %v1215, %v1237
    %v1248 = vsub.f32 %v1220, %v1239
    %v1249 = vsub.f32 %v1223, %v1241
    %v1250 = vmul.f32 %v1242, 1.442695
    %v1251 = vpow.pop %v1250
    %v1252 = vmul.f32 %v1243, 1.442695
    %v1253 = vpow.pop %v1252
    %v1254 = vmul.f32 %v1244, 1.442695
    %v1255 = vpow.pop %v1254
    %v1256 = vmul.f32 %v1245, 1.442695
    %v1257 = vpow.pop %v1256
    %v1258 = vmul.f32 %v1246, 1.442695
    %v1259 = vpow.pop %v1258
    %v1260 = vmul.f32 %v1247, 1.442695
    %v1261 = vpow.pop %v1260
    %v1262 = vmul.f32 %v1248, 1.442695
    %v1263 = vpow.pop %v1262
    %v1264 = vmul.f32 %v1249, 1.442695
    %v1265 = vpow.pop %v1264
    %1266 = vadd.xlane.f32.xlu0 %v1251
    %v1267 = vpop.xlane.xlu0 %1266
    %1268 = vadd.xlane.f32.xlu0 %v1253
    %v1269 = vpop.xlane.xlu0 %1268
    %1270 = vadd.xlane.f32.xlu0 %v1255
    %v1271 = vpop.xlane.xlu0 %1270
    %1272 = vadd.xlane.f32.xlu0 %v1257
    %v1273 = vpop.xlane.xlu0 %1272
    %1274 = vadd.xlane.f32.xlu0 %v1259
    %v1275 = vpop.xlane.xlu0 %1274
    %1276 = vadd.xlane.f32.xlu0 %v1261
    %v1277 = vpop.xlane.xlu0 %1276
    %1278 = vadd.xlane.f32.xlu0 %v1263
    %v1279 = vpop.xlane.xlu0 %1278
    %1280 = vadd.xlane.f32.xlu0 %v1265
    %v1281 = vpop.xlane.xlu0 %1280
    %v1282 = vrcp.pop %v1267
    %v1283 = vmul.f32 %v1251, %v1282
    %v1284 = vrcp.pop %v1269
    %v1285 = vmul.f32 %v1253, %v1284
    %v1286 = vrcp.pop %v1271
    %v1287 = vmul.f32 %v1255, %v1286
    %v1288 = vrcp.pop %v1273
    %v1289 = vmul.f32 %v1257, %v1288
    %v1290 = vrcp.pop %v1275
    %v1291 = vmul.f32 %v1259, %v1290
    %v1292 = vrcp.pop %v1277
    %v1293 = vmul.f32 %v1261, %v1292
    %v1294 = vrcp.pop %v1279
    %v1295 = vmul.f32 %v1263, %v1294
    %v1296 = vrcp.pop %v1281
    %v1297 = vmul.f32 %v1265, %v1296
    %1298 = vst [vmem:[#allocation13] sm:$0xff] %v1283
    %1299 = vst [vmem:[#allocation13 + $0x8] sm:$0xff] %v1285
    %1300 = vst [vmem:[#allocation13 + $0x10] sm:$0xff] %v1287
    %1301 = vst [vmem:[#allocation13 + $0x18] sm:$0xff] %v1289
    %1302 = vst [vmem:[#allocation13 + $0x20] sm:$0xff] %v1291
    %1303 = vst [vmem:[#allocation13 + $0x28] sm:$0xff] %v1293
    %1304 = vst [vmem:[#allocation13 + $0x30] sm:$0xff] %v1295
    %1305 = vst [vmem:[#allocation13 + $0x38] sm:$0xff] %v1297
    // Predicated region
    $region70: #{tpu_custom_call.1} parent=1 // pred_check
      _
    $region71: #{tpu_custom_call.1} parent=1 // pred_check_branch
      %1307 = sbr.rel (0) target = $region73
    $region72: #{tpu_custom_call.1} parent=1 // pred_region
      %s1309 = ssub.s32 1024, 1024
      %1310 = vsyncadd [#allocation4], %s1309
      %s1311 = sshll.u32 [#allocation13], 4
      %s1312 = int_to_ptr.vmem [resolvable:$true] %s1311
      %1317 = dma.vmem_to_hbm [thread:$0]  %s1312, 1024, %s11, [#allocation4], 128, 128, 8
    $region73: #{tpu_custom_call.1} parent=1 // pred_fallthru
      _
    // Predicated region
    $region74: #{tpu_custom_call.1} parent=1 // pred_check
      _
    $region75: #{tpu_custom_call.1} parent=1 // pred_check_branch
      %1319 = sbr.rel (0) target = $region77
    $region76: #{tpu_custom_call.1} parent=1 // pred_region
      %1320 = dma.done [#allocation4], 1024
    $region77: #{tpu_custom_call.1} parent=1 // pred_fallthru
      _
    %1321 = vsyncpa [#allocation3], 1
    %1322 = vsyncpa [#allocation6], 1
    %1323 = vsyncpa [#allocation9], 1
    %1324 = vsyncpa [#allocation12], 1
    %1325 = vsyncpa [#allocation4], 1

</llo_original>
